<compile_context>
chip_gen: v5e
topology: v5e:2x2
jax: 0.10.0
libtpu: 0.0.40
codegen_flags: <defaults>
</compile_context>

<pallas_src>
import math

import jax
import jax.numpy as jnp
from jax.experimental import pallas as pl
from jax.experimental.pallas import tpu as pltpu


def _layer_scale_kernel(x_ref, gamma_ref, o_ref):
    # x_ref: (tr, tl); gamma_ref: (1, tl) broadcasts over rows on the VPU.
    o_ref[...] = x_ref[...] * gamma_ref[...]


def _sublane_pack(dtype) -> int:
    bits = jnp.dtype(dtype).itemsize * 8
    if bits >= 32:
        return 8
    if bits == 16:
        return 16
    return 32


def _vmem_capacity_bytes() -> int:
    # Generation-aware VMEM: 128 MiB on v5e/v6e, 64 MiB per TensorCore on v7x.
    try:
        cap = int(pltpu.get_tpu_info().vmem_capacity_bytes)
        if cap > 0:
            return cap
    except Exception:
        pass
    return 64 * 1024 * 1024  # conservative fallback (v7x-sized)


def layer_scale(x: jax.Array, gamma: jax.Array) -> jax.Array:
    """LayerScale forward: x * gamma with gamma broadcast along the last axis."""
    orig_shape = x.shape
    dim = orig_shape[-1]
    assert gamma.shape == (dim,), "gamma must have shape (dim,)"

    dtype = x.dtype
    # TODO(synk): PyTorch promotes (bf16 x) * (f32 gamma) to f32; here gamma is
    # cast to x.dtype and the multiply happens in x.dtype (same as the common
    # case where the module parameter already matches the activation dtype).
    gamma = gamma.astype(dtype)
    itemsize = jnp.dtype(dtype).itemsize
    pack = _sublane_pack(dtype)

    total = math.prod(orig_shape) if orig_shape else 1
    if total == 0:
        return x

    # ---- lane-dense layout --------------------------------------------------
    if dim % 128 == 0:
        lane = dim                                   # already lane-dense
    elif dim < 1024:
        lane = dim * (128 // math.gcd(dim, 128))     # lcm(dim, 128): fold rows
    else:
        lane = dim                                   # large awkward dim: keep natural
    reps = lane // dim

    flat = x.reshape(total)
    padded_total = -(-total // lane) * lane
    if padded_total != total:
        # Minimal pad (< lane elements) just to satisfy the 2-D reshape; the
        # common case (total % lane == 0, incl. every un-folded dim) needs none.
        flat = jnp.pad(flat, (0, padded_total - total))
    rows = padded_total // lane
    x2 = flat.reshape(rows, lane)
    gamma_row = (jnp.tile(gamma, reps) if reps > 1 else gamma).reshape(1, lane)

    # ---- generation-aware tile sizing ----------------------------------------
    vmem_cap = _vmem_capacity_bytes()
    # 4 large double-buffered block buffers (x + out, 2 each): keep each around
    # 4-8 MiB (v5e/v6e) or ~6 MiB (v7x) -> well inside the scoped VMEM limit.
    target = max(512 * 1024, min(8 * 1024 * 1024, vmem_cap // 10))

    row_bytes = lane * itemsize
    if row_bytes * pack <= target:
        tl = lane                                  # full-lane blocks, tile rows only
        if rows <= pack:
            tr = rows
        else:
            tr = ((target // row_bytes) // pack) * pack
            tr = max(pack, min(tr, (rows // pack) * pack))
    else:
        # One pack of rows already exceeds the target: tile the lane axis too.
        tl = ((target // (pack * itemsize)) // 128) * 128
        tl = max(128, min(tl, lane))
        tr = rows if rows <= pack else pack

    # Keep >= 2 grid steps when there is enough data, so v7x can shard the
    # parallel grid across both TensorCores.
    nr = -(-rows // tr)
    nl = -(-lane // tl)
    if nr * nl == 1 and rows > 2 * pack:
        tr = max(pack, (((rows + 1) // 2) // pack) * pack)
        nr = -(-rows // tr)
    grid = (nr, nl)

    block_bytes = tr * tl * itemsize
    gamma_bytes = tl * itemsize
    vmem_limit = min(vmem_cap, 4 * block_bytes + 2 * gamma_bytes + (2 << 20))
    vmem_limit = max(int(vmem_limit), 4 << 20)

    out = pl.pallas_call(
        _layer_scale_kernel,
        out_shape=jax.ShapeDtypeStruct((rows, lane), dtype),
        grid_spec=pltpu.PrefetchScalarGridSpec(
            num_scalar_prefetch=0,
            grid=grid,
            in_specs=[
                pl.BlockSpec((tr, tl), lambda i, j: (i, j)),
                pl.BlockSpec((1, tl), lambda i, j: (0, j)),
            ],
            out_specs=pl.BlockSpec((tr, tl), lambda i, j: (i, j)),
        ),
        input_output_aliases={0: 0},  # reuse x2's buffer (inplace analogue)
        compiler_params=pltpu.CompilerParams(
            dimension_semantics=("parallel", "parallel"),
            vmem_limit_bytes=vmem_limit,
        ),
    )(x2, gamma_row)

    out_flat = out.reshape(padded_total)
    if padded_total != total:
        out_flat = out_flat[:total]
    return out_flat.reshape(orig_shape)


# TODO(synk): the PyTorch `inplace=True` (x.mul_) variant has no functional-JAX
# equivalent; input_output_aliases gives the closest buffer-reuse behaviour.


if __name__ == "__main__":
    key = jax.random.PRNGKey(0)
    init_values = 1e-05
    ls = jax.jit(layer_scale)
    k0, k1, k2, k3, k4 = jax.random.split(key, 5)

    # 1) Typical transformer-block input (batch, seq, hidden).
    batch, seq, hidden = 2, 8, 32
    x = jax.random.normal(k0, (batch, seq, hidden), dtype=jnp.float32)
    g = init_values * jnp.ones((hidden,), dtype=jnp.float32)
    y = jax.block_until_ready(ls(x, g))
    assert jnp.allclose(y, x * g, atol=1e-6, rtol=1e-6), "mismatch (dim=32)"

    # 2) dim already a multiple of 128 (lane == dim fast path).
    xa = jax.random.normal(k1, (4, 256), dtype=jnp.float32)
    ga = init_values * jnp.ones((256,), dtype=jnp.float32)
    ya = jax.block_until_ready(ls(xa, ga))
    assert jnp.allclose(ya, xa * ga, atol=1e-6, rtol=1e-6), "mismatch (dim=256)"

    # 3) Awkward dim + ragged total (lane folding + minimal pad path).
    xb = jax.random.normal(k2, (7, 100), dtype=jnp.float32)
    gb = init_values * jnp.ones((100,), dtype=jnp.float32)
    yb = jax.block_until_ready(ls(xb, gb))
    assert jnp.allclose(yb, xb * gb, atol=1e-6, rtol=1e-6), "mismatch (dim=100)"

    # 4) Enough rows that the grid splits into >= 2 parallel steps.
    xc = jax.random.normal(k3, (64, 384), dtype=jnp.float32)
    gc_ = init_values * jnp.ones((384,), dtype=jnp.float32)
    yc = jax.block_until_ready(ls(xc, gc_))
    assert jnp.allclose(yc, xc * gc_, atol=1e-6, rtol=1e-6), "mismatch (dim=384)"

    # 5) bf16 path (sublane pack = 16).
    xd = jax.random.normal(k4, (32, 256), dtype=jnp.float32).astype(jnp.bfloat16)
    gd = (init_values * jnp.ones((256,), dtype=jnp.float32)).astype(jnp.bfloat16)
    yd = jax.block_until_ready(ls(xd, gd))
    ref = xd * gd
    assert jnp.allclose(yd.astype(jnp.float32), ref.astype(jnp.float32),
                        atol=1e-3, rtol=1e-2), "mismatch (bf16)"

    print("KERNEL_OK")
</pallas_src>

<mosaic_0001>
module attributes {stable_mosaic.version = 11 : i64} {
  func.func @_layer_scale_kernel(%arg0: i32, %arg1: i32, %arg2: memref<4x128xf32, #tpu.memory_space<vmem>>, %arg3: memref<1x128xf32, #tpu.memory_space<vmem>>, %arg4: memref<4x128xf32, #tpu.memory_space<vmem>>) attributes {dimension_semantics = [#tpu.dimension_semantics<parallel>, #tpu.dimension_semantics<parallel>], iteration_bounds = array<i64: 1, 1>, scalar_prefetch = 0 : i64, scratch_operands = 0 : i64, tpu.core_type = #tpu.core_type<tc>, window_params = [{transform_indices = @transform_0, window_bounds = array<i64: 4, 128>}, {transform_indices = @transform_1, window_bounds = array<i64: 1, 128>}, {transform_indices = @transform_2, window_bounds = array<i64: 4, 128>}]} {
    %c0 = arith.constant 0 : index
    %c0_0 = arith.constant 0 : index
    %0 = vector.load %arg2[%c0, %c0_0] : memref<4x128xf32, #tpu.memory_space<vmem>>, vector<4x128xf32>
    %c0_1 = arith.constant 0 : index
    %c0_2 = arith.constant 0 : index
    %1 = vector.load %arg3[%c0_1, %c0_2] : memref<1x128xf32, #tpu.memory_space<vmem>>, vector<1x128xf32>
    %2 = vector.broadcast %1 : vector<1x128xf32> to vector<4x128xf32>
    %3 = arith.mulf %0, %2 : vector<4x128xf32>
    %c0_3 = arith.constant 0 : index
    %c0_4 = arith.constant 0 : index
    %4 = vector.load %arg4[%c0_3, %c0_4] : memref<4x128xf32, #tpu.memory_space<vmem>>, vector<4x128xf32>
    tpu.vector_store %arg4[%c0_3, %c0_4], %3 {strides = array<i32>} : memref<4x128xf32, #tpu.memory_space<vmem>>, vector<4x128xf32>,
    return
  }
  func.func @transform_0(%arg0: i32, %arg1: i32) -> (i32, i32) {
    %c0_i32 = arith.constant 0 : i32
    return %arg0, %arg1 : i32, i32
  }
  func.func @transform_1(%arg0: i32, %arg1: i32) -> (i32, i32) {
    %c0_i32 = arith.constant 0 : i32
    %c0_i32_0 = arith.constant 0 : i32
    return %c0_i32, %arg1 : i32, i32
  }
  func.func @transform_2(%arg0: i32, %arg1: i32) -> (i32, i32) {
    %c0_i32 = arith.constant 0 : i32
    return %arg0, %arg1 : i32, i32
  }
}

</mosaic_0001>

<llo_original>
// kernel: tile.9
$region0: #{tile.9}
  %s0 = inlined_call_operand.vmem [shape: f32[4,32], index: 0, kind: input, shape index: {}]
  %s1 = inlined_call_operand.vmem [shape: f32[1,128], index: 1, kind: output, shape index: {}]
  $region1: #{tile.9} parent=0
    #allocation0 [shape = 'u8[4096]{0}', space=vmem, size = 0x1000, scoped, tag = 'scoped mem for output reshape']
    #allocation1 [shape = 'u8[4096]{0}', space=vmem, size = 0x1000, scoped, tag = 'scoped mem for input reshape']
    %s3 = ssub.s32 16, 1
    %v4 = vld [vmem:[%s0] sm:%s3]
    %5 = vst [vmem:[#allocation1] sm:%s3] %v4
    %v6 = vld [vmem:[#allocation1] sm:$0x1]
    %vm7 = vcmask 261120
    %8 = vst.msk [vmem:[#allocation0] sm:$0x1] %vm7, %v6
    %s9 = scalar_lea.vmem [#allocation1], 3
    %v10 = vld [vmem:[%s9] sm:$0x1]
    %11 = vrot.lane.b32.xlu0 %v10, 96
    %v12 = vpop.permute.xlu0 %11
    %vm13 = vcmask 1048320
    %14 = vst.msk [vmem:[#allocation0] sm:$0x1] %vm13, %v12
    %s15 = scalar_lea.vmem [#allocation1], 2
    %v16 = vld [vmem:[%s15] sm:$0x1]
    %17 = vrot.lane.b32.xlu0 %v16, 64
    %v18 = vpop.permute.xlu0 %17
    %vm19 = vcmask 785920
    %20 = vst.msk [vmem:[#allocation0] sm:$0x1] %vm19, %v18
    %s21 = scalar_lea.vmem [#allocation1], 1
    %v22 = vld [vmem:[%s21] sm:$0x1]
    %23 = vrot.lane.b32.xlu0 %v22, 32
    %v24 = vpop.permute.xlu0 %23
    %vm25 = vcmask 523520
    %26 = vst.msk [vmem:[#allocation0] sm:$0x1] %vm25, %v24
    %s28 = ssub.s32 2, 1
    %v29 = vld [vmem:[#allocation0] sm:%s28]
    %s31 = ssub.s32 2, 1
    %32 = vst [vmem:[%s1] sm:%s31] %v29

// kernel: tile.8
$region0: #{tile.8}
  #allocation0 [shape = 's32[1]{0}', space=sflag, size = 0x4, scoped, tag = 'scoped memory for tile.8']
  %s0 = inlined_call_operand.vmem [shape: f32[32], index: 0, kind: input, shape index: {}]
  %s1 = inlined_call_operand.vmem [shape: f32[4,32], index: 1, kind: output, shape index: {}]
  // Predicated region
  $region2: #{tile.8} parent=0 // pred_check
    _
  $region3: #{tile.8} parent=0 // pred_check_branch
    %3 = sbr.rel (0) target = $region5
  $region4: #{tile.8} parent=0 // pred_region
    _
  $region5: #{tile.8} parent=0 // pred_fallthru
    _
  %v4 = vld [vmem:[%s0] ss:$0 sm:$0xff]
  %5 = vst [vmem:[%s1] sm:$0xf] %v4

// kernel: layer_scale.1
$region0: #{layer_scale.1}
  #allocation0 [shape = 'u32[]', space=smem, size = 0x4, offset = 0x4, fixed_abs, tag = 'smem constant byte address 0x4 - core index']
  #allocation1 [shape = 'u32[72,128]{1,0:T(1,128)}', space=vmem, size = 0x9000, scoped, tag = 'internal scratch']
  %s0 = inlined_call_operand.vmem [shape: f32[4,128], index: 0, kind: input, shape index: {}, may-alias: {0,2}]
  %s1 = inlined_call_operand.vmem [shape: f32[1,128], index: 1, kind: input, shape index: {}]
  %s2 = inlined_call_operand.vmem [shape: f32[4,128], index: 2, kind: output, shape index: {}, may-alias: {0,2}]
  %s3 = sld [smem:[#allocation0]]
  $region18: #{layer_scale.1} parent=0
    _
  %s5 = ssub.s32 1, %s3
  %s6 = scalar_select 0, %s5, %s3
  // Predicated region
  $region2: #{layer_scale.1} parent=0 // pred_check
    _
  $region3: #{layer_scale.1} parent=0 // pred_check_branch
    %8 = sbr.rel (0) target = $region5
  $region4: #{layer_scale.1} parent=0 // pred_region
    _
  $region5: #{layer_scale.1} parent=0 // pred_fallthru
    _
  // Predicated region
  $region6: #{layer_scale.1} parent=0 // pred_check
    _
  $region7: #{layer_scale.1} parent=0 // pred_check_branch
    %10 = sbr.rel (0) target = $region9
  $region8: #{layer_scale.1} parent=0 // pred_region
    _
  $region9: #{layer_scale.1} parent=0 // pred_fallthru
    _
  %v11 = vld [vmem:[%s0] sm:$0xf]
  %v12 = vld [vmem:[%s1] sm:$0x1]
  %v14 = vperm.slane %v12, 0
  %v16 = vmul.f32 %v11, %v14
  %17 = vst [vmem:[%s2] sm:$0xf] %v16
  // Predicated region
  $region10: #{layer_scale.1} parent=0 // pred_check
    _
  $region11: #{layer_scale.1} parent=0 // pred_check_branch
    %19 = sbr.rel (0) target = $region13
  $region12: #{layer_scale.1} parent=0 // pred_region
    _
  $region13: #{layer_scale.1} parent=0 // pred_fallthru
    _
  // Predicated region
  $region14: #{layer_scale.1} parent=0 // pred_check
    _
  $region15: #{layer_scale.1} parent=0 // pred_check_branch
    %21 = sbr.rel (0) target = $region17
  $region16: #{layer_scale.1} parent=0 // pred_region
    _
  $region17: #{layer_scale.1} parent=0 // pred_fallthru
    _

</llo_original>
